<compile_context>
chip_gen: v7x
topology: tpu7x:2x2x1
jax: 0.10.0
libtpu: 0.0.40
codegen_flags: <defaults>
</compile_context>

<pallas_src>
import functools

import jax
import jax.numpy as jnp
from jax.experimental import pallas as pl
from jax.experimental.pallas import tpu as pltpu


def mlp_kernel(x_ref, w1_ref, b1_ref, w2_ref, b2_ref, o_ref):
    # x_ref:  (11, TB)  -- batch on lanes (lane-dense)
    # w1_ref: (8, 11)   -- PyTorch nn.Linear(11, 8).weight layout (out, in)
    # b1_ref: (8, 1)    -- hidden bias as a column
    # w2_ref: (8, 1)    -- output weights as a column (broadcast along lanes)
    # b2_ref: (1, 1)
    # o_ref:  (1, TB)   -- lane-dense output tile
    x = x_ref[...]                      # (F, TB) f32
    w1 = w1_ref[...]                    # (H, F)
    f = x.shape[0]
    h_dim = w1.shape[0]
    tb = x.shape[1]

    # Hidden layer on the VPU: F broadcast multiply-adds over (H, TB).
    acc = jnp.zeros((h_dim, tb), jnp.float32)
    for i in range(f):                  # static unroll (F = 11, tiny)
        acc = acc + w1[:, i : i + 1] * x[i : i + 1, :]
    hidden = jnp.maximum(acc + b1_ref[...], 0.0)          # ReLU, (H, TB)

    # Output layer: weighted sublane reduction (XLU) + bias -> (1, TB).
    out = jnp.sum(hidden * w2_ref[...], axis=0, keepdims=True) + b2_ref[...]
    o_ref[...] = out.astype(o_ref.dtype)


@functools.partial(jax.jit, static_argnames=("block_b",))
def mlp_forward(x, w1, b1, w2, b2, *, block_b=512):
    """x: (B, 11); w1: (8, 11); b1: (8,); w2: (1, 8); b2: (1,) -> (B, 1)."""
    B, F = x.shape
    H = w1.shape[0]

    # Batch goes on the lane axis. Tile up to `block_b` columns per grid step,
    # clamped to a 128 multiple for small B (last block dim must be %128 == 0).
    tb = min(block_b, pl.cdiv(B, 128) * 128)
    Bp = pl.cdiv(B, tb) * tb

    xT = x.T                                      # (F, B): layout plumbing only
    if Bp != B:
        xT = jnp.pad(xT, ((0, 0), (0, Bp - B)))

    b1c = b1.reshape(H, 1).astype(jnp.float32)
    w2c = w2.reshape(H, 1).astype(jnp.float32)    # column for lane broadcast
    b2c = b2.reshape(1, 1).astype(jnp.float32)

    bytes_io = (F * Bp + Bp) * x.dtype.itemsize + (H * F + 2 * H + 1) * 4
    out = pl.pallas_call(
        mlp_kernel,
        out_shape=jax.ShapeDtypeStruct((1, Bp), x.dtype),
        grid=(Bp // tb,),
        in_specs=[
            pl.BlockSpec((F, tb), lambda i: (0, i)),   # streamed batch tiles
            pl.BlockSpec((H, F), lambda i: (0, 0)),    # weights: constant index
            pl.BlockSpec((H, 1), lambda i: (0, 0)),    #   -> DMA'd once, resident
            pl.BlockSpec((H, 1), lambda i: (0, 0)),
            pl.BlockSpec((1, 1), lambda i: (0, 0)),
        ],
        out_specs=pl.BlockSpec((1, tb), lambda i: (0, i)),
        compiler_params=pltpu.CompilerParams(
            dimension_semantics=("parallel",),          # megacore / v7x 2 TCs
        ),
        cost_estimate=pl.CostEstimate(
            flops=2 * Bp * (F * H + H),
            transcendentals=0,
            bytes_accessed=bytes_io,
        ),
    )(xT, w1.astype(jnp.float32), b1c, w2c, b2c)

    return out[:, :B].T                               # back to (B, 1)


def init_params(key):
    """Deterministic init matching PyTorch nn.Linear shapes exactly."""
    k1, k2, k3, k4 = jax.random.split(key, 4)
    # nn.Linear(11, 8): weight (8, 11), bias (8,)
    bound1 = 1.0 / jnp.sqrt(11.0)
    w1 = jax.random.uniform(k1, (8, 11), jnp.float32, -bound1, bound1)
    b1 = jax.random.uniform(k2, (8,), jnp.float32, -bound1, bound1)
    # nn.Linear(8, 1): weight (1, 8), bias (1,)
    bound2 = 1.0 / jnp.sqrt(8.0)
    w2 = jax.random.uniform(k3, (1, 8), jnp.float32, -bound2, bound2)
    b2 = jax.random.uniform(k4, (1,), jnp.float32, -bound2, bound2)
    return w1, b1, w2, b2


if __name__ == "__main__":
    key = jax.random.PRNGKey(0)
    kx, kp = jax.random.split(key)
    B = 8
    x = jax.random.normal(kx, (B, 11), jnp.float32)
    w1, b1, w2, b2 = init_params(kp)

    out = mlp_forward(x, w1, b1, w2, b2)
    jax.block_until_ready(out)

    # Reference check in plain JAX (same math as the PyTorch module).
    ref = jnp.maximum(x @ w1.T + b1, 0.0) @ w2.T + b2
    assert out.shape == (B, 1)
    assert jnp.allclose(out, ref, atol=1e-5, rtol=1e-5)

    print("KERNEL_OK")
</pallas_src>

<mosaic_0001>
module attributes {stable_mosaic.version = 11 : i64} {
  func.func @mlp_kernel(%arg0: i32, %arg1: memref<11x128xf32, #tpu.memory_space<vmem>>, %arg2: memref<8x11xf32, #tpu.memory_space<vmem>>, %arg3: memref<8x1xf32, #tpu.memory_space<vmem>>, %arg4: memref<8x1xf32, #tpu.memory_space<vmem>>, %arg5: memref<1x1xf32, #tpu.memory_space<vmem>>, %arg6: memref<1x128xf32, #tpu.memory_space<vmem>>) attributes {dimension_semantics = [#tpu.dimension_semantics<parallel>], iteration_bounds = array<i64: 1>, scalar_prefetch = 0 : i64, scratch_operands = 0 : i64, tpu.core_type = #tpu.core_type<tc>, window_params = [{transform_indices = @transform_0, window_bounds = array<i64: 11, 128>}, {pipeline_mode = #tpu.pipeline_mode<synchronous>, transform_indices = @transform_1, window_bounds = array<i64: 8, 11>}, {pipeline_mode = #tpu.pipeline_mode<synchronous>, transform_indices = @transform_2, window_bounds = array<i64: 8, 1>}, {pipeline_mode = #tpu.pipeline_mode<synchronous>, transform_indices = @transform_3, window_bounds = array<i64: 8, 1>}, {pipeline_mode = #tpu.pipeline_mode<synchronous>, transform_indices = @transform_4, window_bounds = array<i64: 1, 1>}, {transform_indices = @transform_5, window_bounds = array<i64: 1, 128>}]} {
    %c0 = arith.constant 0 : index
    %c0_0 = arith.constant 0 : index
    %0 = vector.load %arg1[%c0, %c0_0] : memref<11x128xf32, #tpu.memory_space<vmem>>, vector<11x128xf32>
    %c0_1 = arith.constant 0 : index
    %c0_2 = arith.constant 0 : index
    %1 = vector.load %arg2[%c0_1, %c0_2] : memref<8x11xf32, #tpu.memory_space<vmem>>, vector<8x11xf32>
    %cst = arith.constant 0.000000e+00 : f32
    %2 = vector.broadcast %cst : f32 to vector<8x128xf32>
    %3 = vector.extract_strided_slice %1 {offsets = [0, 0], sizes = [8, 1], strides = [1, 1]} : vector<8x11xf32> to vector<8x1xf32>
    %4 = vector.extract_strided_slice %0 {offsets = [0, 0], sizes = [1, 128], strides = [1, 1]} : vector<11x128xf32> to vector<1x128xf32>
    %5 = vector.broadcast %3 : vector<8x1xf32> to vector<8x128xf32>
    %6 = vector.broadcast %4 : vector<1x128xf32> to vector<8x128xf32>
    %7 = arith.mulf %5, %6 : vector<8x128xf32>
    %8 = arith.addf %2, %7 : vector<8x128xf32>
    %9 = vector.extract_strided_slice %1 {offsets = [0, 1], sizes = [8, 1], strides = [1, 1]} : vector<8x11xf32> to vector<8x1xf32>
    %10 = vector.extract_strided_slice %0 {offsets = [1, 0], sizes = [1, 128], strides = [1, 1]} : vector<11x128xf32> to vector<1x128xf32>
    %11 = vector.broadcast %9 : vector<8x1xf32> to vector<8x128xf32>
    %12 = vector.broadcast %10 : vector<1x128xf32> to vector<8x128xf32>
    %13 = arith.mulf %11, %12 : vector<8x128xf32>
    %14 = arith.addf %8, %13 : vector<8x128xf32>
    %15 = vector.extract_strided_slice %1 {offsets = [0, 2], sizes = [8, 1], strides = [1, 1]} : vector<8x11xf32> to vector<8x1xf32>
    %16 = vector.extract_strided_slice %0 {offsets = [2, 0], sizes = [1, 128], strides = [1, 1]} : vector<11x128xf32> to vector<1x128xf32>
    %17 = vector.broadcast %15 : vector<8x1xf32> to vector<8x128xf32>
    %18 = vector.broadcast %16 : vector<1x128xf32> to vector<8x128xf32>
    %19 = arith.mulf %17, %18 : vector<8x128xf32>
    %20 = arith.addf %14, %19 : vector<8x128xf32>
    %21 = vector.extract_strided_slice %1 {offsets = [0, 3], sizes = [8, 1], strides = [1, 1]} : vector<8x11xf32> to vector<8x1xf32>
    %22 = vector.extract_strided_slice %0 {offsets = [3, 0], sizes = [1, 128], strides = [1, 1]} : vector<11x128xf32> to vector<1x128xf32>
    %23 = vector.broadcast %21 : vector<8x1xf32> to vector<8x128xf32>
    %24 = vector.broadcast %22 : vector<1x128xf32> to vector<8x128xf32>
    %25 = arith.mulf %23, %24 : vector<8x128xf32>
    %26 = arith.addf %20, %25 : vector<8x128xf32>
    %27 = vector.extract_strided_slice %1 {offsets = [0, 4], sizes = [8, 1], strides = [1, 1]} : vector<8x11xf32> to vector<8x1xf32>
    %28 = vector.extract_strided_slice %0 {offsets = [4, 0], sizes = [1, 128], strides = [1, 1]} : vector<11x128xf32> to vector<1x128xf32>
    %29 = vector.broadcast %27 : vector<8x1xf32> to vector<8x128xf32>
    %30 = vector.broadcast %28 : vector<1x128xf32> to vector<8x128xf32>
    %31 = arith.mulf %29, %30 : vector<8x128xf32>
    %32 = arith.addf %26, %31 : vector<8x128xf32>
    %33 = vector.extract_strided_slice %1 {offsets = [0, 5], sizes = [8, 1], strides = [1, 1]} : vector<8x11xf32> to vector<8x1xf32>
    %34 = vector.extract_strided_slice %0 {offsets = [5, 0], sizes = [1, 128], strides = [1, 1]} : vector<11x128xf32> to vector<1x128xf32>
    %35 = vector.broadcast %33 : vector<8x1xf32> to vector<8x128xf32>
    %36 = vector.broadcast %34 : vector<1x128xf32> to vector<8x128xf32>
    %37 = arith.mulf %35, %36 : vector<8x128xf32>
    %38 = arith.addf %32, %37 : vector<8x128xf32>
    %39 = vector.extract_strided_slice %1 {offsets = [0, 6], sizes = [8, 1], strides = [1, 1]} : vector<8x11xf32> to vector<8x1xf32>
    %40 = vector.extract_strided_slice %0 {offsets = [6, 0], sizes = [1, 128], strides = [1, 1]} : vector<11x128xf32> to vector<1x128xf32>
    %41 = vector.broadcast %39 : vector<8x1xf32> to vector<8x128xf32>
    %42 = vector.broadcast %40 : vector<1x128xf32> to vector<8x128xf32>
    %43 = arith.mulf %41, %42 : vector<8x128xf32>
    %44 = arith.addf %38, %43 : vector<8x128xf32>
    %45 = vector.extract_strided_slice %1 {offsets = [0, 7], sizes = [8, 1], strides = [1, 1]} : vector<8x11xf32> to vector<8x1xf32>
    %46 = vector.extract_strided_slice %0 {offsets = [7, 0], sizes = [1, 128], strides = [1, 1]} : vector<11x128xf32> to vector<1x128xf32>
    %47 = vector.broadcast %45 : vector<8x1xf32> to vector<8x128xf32>
    %48 = vector.broadcast %46 : vector<1x128xf32> to vector<8x128xf32>
    %49 = arith.mulf %47, %48 : vector<8x128xf32>
    %50 = arith.addf %44, %49 : vector<8x128xf32>
    %51 = vector.extract_strided_slice %1 {offsets = [0, 8], sizes = [8, 1], strides = [1, 1]} : vector<8x11xf32> to vector<8x1xf32>
    %52 = vector.extract_strided_slice %0 {offsets = [8, 0], sizes = [1, 128], strides = [1, 1]} : vector<11x128xf32> to vector<1x128xf32>
    %53 = vector.broadcast %51 : vector<8x1xf32> to vector<8x128xf32>
    %54 = vector.broadcast %52 : vector<1x128xf32> to vector<8x128xf32>
    %55 = arith.mulf %53, %54 : vector<8x128xf32>
    %56 = arith.addf %50, %55 : vector<8x128xf32>
    %57 = vector.extract_strided_slice %1 {offsets = [0, 9], sizes = [8, 1], strides = [1, 1]} : vector<8x11xf32> to vector<8x1xf32>
    %58 = vector.extract_strided_slice %0 {offsets = [9, 0], sizes = [1, 128], strides = [1, 1]} : vector<11x128xf32> to vector<1x128xf32>
    %59 = vector.broadcast %57 : vector<8x1xf32> to vector<8x128xf32>
    %60 = vector.broadcast %58 : vector<1x128xf32> to vector<8x128xf32>
    %61 = arith.mulf %59, %60 : vector<8x128xf32>
    %62 = arith.addf %56, %61 : vector<8x128xf32>
    %63 = vector.extract_strided_slice %1 {offsets = [0, 10], sizes = [8, 1], strides = [1, 1]} : vector<8x11xf32> to vector<8x1xf32>
    %64 = vector.extract_strided_slice %0 {offsets = [10, 0], sizes = [1, 128], strides = [1, 1]} : vector<11x128xf32> to vector<1x128xf32>
    %65 = vector.broadcast %63 : vector<8x1xf32> to vector<8x128xf32>
    %66 = vector.broadcast %64 : vector<1x128xf32> to vector<8x128xf32>
    %67 = arith.mulf %65, %66 : vector<8x128xf32>
    %68 = arith.addf %62, %67 : vector<8x128xf32>
    %c0_3 = arith.constant 0 : index
    %c0_4 = arith.constant 0 : index
    %69 = vector.load %arg3[%c0_3, %c0_4] : memref<8x1xf32, #tpu.memory_space<vmem>>, vector<8x1xf32>
    %70 = vector.broadcast %69 : vector<8x1xf32> to vector<8x128xf32>
    %71 = arith.addf %68, %70 : vector<8x128xf32>
    %cst_5 = arith.constant 0.000000e+00 : f32
    %72 = vector.broadcast %cst_5 : f32 to vector<8x128xf32>
    %73 = arith.maximumf %71, %72 : vector<8x128xf32>
    %c0_6 = arith.constant 0 : index
    %c0_7 = arith.constant 0 : index
    %74 = vector.load %arg4[%c0_6, %c0_7] : memref<8x1xf32, #tpu.memory_space<vmem>>, vector<8x1xf32>
    %75 = vector.broadcast %74 : vector<8x1xf32> to vector<8x128xf32>
    %76 = arith.mulf %73, %75 : vector<8x128xf32>
    %cst_8 = arith.constant dense<0.000000e+00> : vector<128xf32>
    %77 = vector.multi_reduction <add>, %76, %cst_8 [0] : vector<8x128xf32> to vector<128xf32>
    %78 = vector.shape_cast %77 : vector<128xf32> to vector<1x128xf32>
    %c0_9 = arith.constant 0 : index
    %c0_10 = arith.constant 0 : index
    %79 = vector.load %arg5[%c0_9, %c0_10] : memref<1x1xf32, #tpu.memory_space<vmem>>, vector<1x1xf32>
    %80 = vector.broadcast %79 : vector<1x1xf32> to vector<1x128xf32>
    %81 = arith.addf %78, %80 : vector<1x128xf32>
    %c0_11 = arith.constant 0 : index
    %c0_12 = arith.constant 0 : index
    %82 = vector.load %arg6[%c0_11, %c0_12] : memref<1x128xf32, #tpu.memory_space<vmem>>, vector<1x128xf32>
    tpu.vector_store %arg6[%c0_11, %c0_12], %81 {strides = array<i32>} : memref<1x128xf32, #tpu.memory_space<vmem>>, vector<1x128xf32>,
    return
  }
  func.func @transform_0(%arg0: i32) -> (i32, i32) {
    %c0_i32 = arith.constant 0 : i32
    %c0_i32_0 = arith.constant 0 : i32
    return %c0_i32, %arg0 : i32, i32
  }
  func.func @transform_1(%arg0: i32) -> (i32, i32) {
    %c0_i32 = arith.constant 0 : i32
    %c0_i32_0 = arith.constant 0 : i32
    %c0_i32_1 = arith.constant 0 : i32
    return %c0_i32, %c0_i32_0 : i32, i32
  }
  func.func @transform_2(%arg0: i32) -> (i32, i32) {
    %c0_i32 = arith.constant 0 : i32
    %c0_i32_0 = arith.constant 0 : i32
    %c0_i32_1 = arith.constant 0 : i32
    return %c0_i32, %c0_i32_0 : i32, i32
  }
  func.func @transform_3(%arg0: i32) -> (i32, i32) {
    %c0_i32 = arith.constant 0 : i32
    %c0_i32_0 = arith.constant 0 : i32
    %c0_i32_1 = arith.constant 0 : i32
    return %c0_i32, %c0_i32_0 : i32, i32
  }
  func.func @transform_4(%arg0: i32) -> (i32, i32) {
    %c0_i32 = arith.constant 0 : i32
    %c0_i32_0 = arith.constant 0 : i32
    %c0_i32_1 = arith.constant 0 : i32
    return %c0_i32, %c0_i32_0 : i32, i32
  }
  func.func @transform_5(%arg0: i32) -> (i32, i32) {
    %c0_i32 = arith.constant 0 : i32
    %c0_i32_0 = arith.constant 0 : i32
    return %c0_i32, %arg0 : i32, i32
  }
}

</mosaic_0001>

<llo_original>
// kernel: mlp_forward.1
$region0: #{mlp_forward.1}
  #allocation0 [shape = 'u32[]', space=smem, size = 0x4, offset = 0x4, fixed_abs, tag = 'smem constant byte address 0x4 - core index']
  #allocation1 [shape = 'u32[144,128]{1,0:T(1,128)}', space=vmem, size = 0x12000, scoped, tag = 'internal scratch']
  #allocation2 [shape = 'f32[1,1]{1,0:T(1,128)S(1)}', space=vmem, size = 0x200, scoped, tag = 'scoped memory for mlp_forward.1']
  %s0 = inlined_call_operand.vmem [shape: f32[11,128], index: 0, kind: input, shape index: {}]
  %s1 = inlined_call_operand.vmem [shape: f32[8,11], index: 1, kind: input, shape index: {}]
  %s2 = inlined_call_operand.vmem [shape: f32[8,1], index: 2, kind: input, shape index: {}]
  %s3 = inlined_call_operand.vmem [shape: f32[8,1], index: 3, kind: input, shape index: {}]
  %s4 = inlined_call_operand.<no memory space> [shape: f32[1,1], index: 4, kind: input, shape index: {}]
  %s5 = inlined_call_operand.vmem [shape: f32[1,128], index: 5, kind: output, shape index: {}]
  %s6 = sld [smem:[#allocation0]]
  $region30: #{mlp_forward.1} parent=0
    _
  %s8 = ssub.s32 1, %s6
  %s9 = scalar_select 0, %s8, %s6
  %v10 = vstv %s4
  %11 = vst [vmem:[#allocation2] sm:$0x1] %v10
  // Predicated region
  $region2: #{mlp_forward.1} parent=0 // pred_check
    _
  $region3: #{mlp_forward.1} parent=0 // pred_check_branch
    %13 = sbr.rel (0) target = $region5
  $region4: #{mlp_forward.1} parent=0 // pred_region
    _
  $region5: #{mlp_forward.1} parent=0 // pred_fallthru
    _
  // Predicated region
  $region6: #{mlp_forward.1} parent=0 // pred_check
    _
  $region7: #{mlp_forward.1} parent=0 // pred_check_branch
    %15 = sbr.rel (0) target = $region9
  $region8: #{mlp_forward.1} parent=0 // pred_region
    _
  $region9: #{mlp_forward.1} parent=0 // pred_fallthru
    _
  // Predicated region
  $region10: #{mlp_forward.1} parent=0 // pred_check
    _
  $region11: #{mlp_forward.1} parent=0 // pred_check_branch
    %17 = sbr.rel (0) target = $region13
  $region12: #{mlp_forward.1} parent=0 // pred_region
    _
  $region13: #{mlp_forward.1} parent=0 // pred_fallthru
    _
  // Predicated region
  $region14: #{mlp_forward.1} parent=0 // pred_check
    _
  $region15: #{mlp_forward.1} parent=0 // pred_check_branch
    %19 = sbr.rel (0) target = $region17
  $region16: #{mlp_forward.1} parent=0 // pred_region
    _
  $region17: #{mlp_forward.1} parent=0 // pred_fallthru
    _
  // Predicated region
  $region18: #{mlp_forward.1} parent=0 // pred_check
    _
  $region19: #{mlp_forward.1} parent=0 // pred_check_branch
    %21 = sbr.rel (0) target = $region21
  $region20: #{mlp_forward.1} parent=0 // pred_region
    _
  $region21: #{mlp_forward.1} parent=0 // pred_fallthru
    _
  %v22 = vld [vmem:[%s0] sm:$0xff]
  %v23 = vld [vmem:[%s0 + $0x8] sm:$0x7]
  %v24 = vld [vmem:[%s1] sm:$0xff]
  %26 = vset.pattern.permute.xlu0 0
  %27 = vperm.xlu0 %26, %v24
  %v28 = vpop.permute.xlu0 %27
  %v30 = vlaneseq
  %v31 = vshrl.u32 %v30, 7
  %v32 = vsub.s32 0, %v31
  %v33 = vrot.slane %v22, %v32
  %v34 = vmul.f32 %v28, %v33
  %v35 = vadd.f32 %v34, 0.0
  %36 = vset.pattern.permute.xlu0 1
  %37 = vperm.xlu0 %36, %v24
  %v38 = vpop.permute.xlu0 %37
  %v40 = vlaneseq
  %v41 = vshrl.u32 %v40, 7
  %v42 = vsub.s32 1, %v41
  %v43 = vrot.slane %v22, %v42
  %v44 = vmul.f32 %v38, %v43
  %v45 = vadd.f32 %v35, %v44
  %46 = vset.pattern.permute.xlu0 2
  %47 = vperm.xlu0 %46, %v24
  %v48 = vpop.permute.xlu0 %47
  %v50 = vlaneseq
  %v51 = vshrl.u32 %v50, 7
  %v52 = vsub.s32 2, %v51
  %v53 = vrot.slane %v22, %v52
  %v54 = vmul.f32 %v48, %v53
  %v55 = vadd.f32 %v45, %v54
  %56 = vset.pattern.permute.xlu0 3
  %57 = vperm.xlu0 %56, %v24
  %v58 = vpop.permute.xlu0 %57
  %v60 = vlaneseq
  %v61 = vshrl.u32 %v60, 7
  %v62 = vsub.s32 3, %v61
  %v63 = vrot.slane %v22, %v62
  %v64 = vmul.f32 %v58, %v63
  %v65 = vadd.f32 %v55, %v64
  %66 = vset.pattern.permute.xlu0 4
  %67 = vperm.xlu0 %66, %v24
  %v68 = vpop.permute.xlu0 %67
  %v70 = vlaneseq
  %v71 = vshrl.u32 %v70, 7
  %v72 = vsub.s32 4, %v71
  %v73 = vrot.slane %v22, %v72
  %v74 = vmul.f32 %v68, %v73
  %v75 = vadd.f32 %v65, %v74
  %76 = vset.pattern.permute.xlu0 5
  %77 = vperm.xlu0 %76, %v24
  %v78 = vpop.permute.xlu0 %77
  %v80 = vlaneseq
  %v81 = vshrl.u32 %v80, 7
  %v82 = vsub.s32 5, %v81
  %v83 = vrot.slane %v22, %v82
  %v84 = vmul.f32 %v78, %v83
  %v85 = vadd.f32 %v75, %v84
  %86 = vset.pattern.permute.xlu0 6
  %87 = vperm.xlu0 %86, %v24
  %v88 = vpop.permute.xlu0 %87
  %v90 = vlaneseq
  %v91 = vshrl.u32 %v90, 7
  %v92 = vsub.s32 6, %v91
  %v93 = vrot.slane %v22, %v92
  %v94 = vmul.f32 %v88, %v93
  %v95 = vadd.f32 %v85, %v94
  %96 = vset.pattern.permute.xlu0 7
  %97 = vperm.xlu0 %96, %v24
  %v98 = vpop.permute.xlu0 %97
  %v100 = vlaneseq
  %v101 = vshrl.u32 %v100, 7
  %v102 = vsub.s32 7, %v101
  %v103 = vrot.slane %v22, %v102
  %v104 = vmul.f32 %v98, %v103
  %v105 = vadd.f32 %v95, %v104
  %106 = vset.pattern.permute.xlu0 8
  %107 = vperm.xlu0 %106, %v24
  %v108 = vpop.permute.xlu0 %107
  %v110 = vlaneseq
  %v111 = vshrl.u32 %v110, 7
  %v112 = vsub.s32 0, %v111
  %v113 = vrot.slane %v23, %v112
  %v114 = vmul.f32 %v108, %v113
  %v115 = vadd.f32 %v105, %v114
  %116 = vset.pattern.permute.xlu0 9
  %117 = vperm.xlu0 %116, %v24
  %v118 = vpop.permute.xlu0 %117
  %v120 = vlaneseq
  %v121 = vshrl.u32 %v120, 7
  %v122 = vsub.s32 1, %v121
  %v123 = vrot.slane %v23, %v122
  %v124 = vmul.f32 %v118, %v123
  %v125 = vadd.f32 %v115, %v124
  %126 = vset.pattern.permute.xlu0 10
  %127 = vperm.xlu0 %126, %v24
  %v128 = vpop.permute.xlu0 %127
  %v130 = vlaneseq
  %v131 = vshrl.u32 %v130, 7
  %v132 = vsub.s32 2, %v131
  %v133 = vrot.slane %v23, %v132
  %v134 = vmul.f32 %v128, %v133
  %v135 = vadd.f32 %v125, %v134
  %v136 = vld [vmem:[%s2] sm:$0xff]
  %138 = vset.pattern.permute.xlu0 0
  %139 = vperm.xlu0 %138, %v136
  %v140 = vpop.permute.xlu0 %139
  %v142 = vadd.f32 %v135, %v140
  %v143 = vmax.f32 %v142, 0.0
  %v144 = vld [vmem:[%s3] sm:$0xff]
  %146 = vset.pattern.permute.xlu0 0
  %147 = vperm.xlu0 %146, %v144
  %v148 = vpop.permute.xlu0 %147
  %v150 = vmul.f32 %v143, %v148
  %v151 = vrot.slane %v150, 4
  %v152 = vadd.f32 %v150, %v151
  %v153 = vrot.slane %v152, 2
  %v154 = vadd.f32 %v152, %v153
  %v155 = vrot.slane %v154, 1
  %v156 = vadd.f32 %v154, %v155
  %v157 = vld [vmem:[#allocation2] sm:$0x1]
  %159 = vset.pattern.permute.xlu0 0
  %160 = vperm.xlu0 %159, %v157
  %v161 = vpop.permute.xlu0 %160
  %v163 = vlaneseq
  %v164 = vshrl.u32 %v163, 7
  %v165 = vsub.s32 0, %v164
  %v166 = vrot.slane %v161, %v165
  %v167 = vadd.f32 %v156, %v166
  %168 = vst [vmem:[%s5] sm:$0x1] %v167
  // Predicated region
  $region22: #{mlp_forward.1} parent=0 // pred_check
    _
  $region23: #{mlp_forward.1} parent=0 // pred_check_branch
    %170 = sbr.rel (0) target = $region25
  $region24: #{mlp_forward.1} parent=0 // pred_region
    _
  $region25: #{mlp_forward.1} parent=0 // pred_fallthru
    _
  // Predicated region
  $region26: #{mlp_forward.1} parent=0 // pred_check
    _
  $region27: #{mlp_forward.1} parent=0 // pred_check_branch
    %172 = sbr.rel (0) target = $region29
  $region28: #{mlp_forward.1} parent=0 // pred_region
    _
  $region29: #{mlp_forward.1} parent=0 // pred_fallthru
    _

</llo_original>
